<compile_context>
chip_gen: v7x
topology: tpu7x:2x2x1
jax: 0.10.0
libtpu: 0.0.40
codegen_flags: <defaults>
</compile_context>

<pallas_src>
import numpy as np
import jax
import jax.numpy as jnp
from jax.experimental import pallas as pl
from jax.experimental.pallas import tpu as pltpu


# ---------------------------------------------------------------------------
# One-time (per molecule) precompute: per_pred[j] = sum_{p,q} mask_j[p,q]*dist[p,q]
# ---------------------------------------------------------------------------
def per_pred_kernel(dist_ref, masks_t_ref, out_ref):
    # dist_ref:    (1, P)     f32   flattened dist matrix (row-major, lane-dense)
    # masks_t_ref: (P, TILE)  bf16  column tile of the transposed mask matrix
    # out_ref:     (1, TILE)  f32   lane-dense per-predicate masked sums
    m = masks_t_ref[...].astype(jnp.float32)     # bf16 DMA, f32 accumulate
    out_ref[...] = jnp.dot(dist_ref[...], m, preferred_element_type=jnp.float32)


def precompute_per_pred(masks_t_bf16, dist):
    """masks_t_bf16: (P, P) bf16 transposed mask matrix, dist: (N, N) f32."""
    P = masks_t_bf16.shape[0]
    n = dist.shape[0]
    assert P == n * n and masks_t_bf16.shape == (P, P)
    dist_row = dist.reshape(1, P).astype(jnp.float32)

    tile_j = min(P, 1024)
    assert P % tile_j == 0
    grid = (P // tile_j,)

    return pl.pallas_call(
        per_pred_kernel,
        out_shape=jax.ShapeDtypeStruct((1, P), jnp.float32),
        grid=grid,
        in_specs=[
            pl.BlockSpec((1, P), lambda j: (0, 0)),        # dist row, replicated
            pl.BlockSpec((P, tile_j), lambda j: (0, j)),   # mask column tile
        ],
        out_specs=pl.BlockSpec((1, tile_j), lambda j: (0, j)),
        compiler_params=pltpu.CompilerParams(
            dimension_semantics=("parallel",)),
    )(dist_row, masks_t_bf16)


# ---------------------------------------------------------------------------
# Hot per-training-step kernel: softmax(weights) . per_pred  ->  scalar
# ---------------------------------------------------------------------------
def sampler_step_kernel(w_ref, per_pred_ref, out_ref):
    w = w_ref[...]                                        # (1, P)
    m = jnp.max(w, axis=-1, keepdims=True)
    e = jnp.exp(w - m)                                    # EUP
    denom = jnp.sum(e, axis=-1, keepdims=True)            # (1, 1)
    num = jnp.sum(e * per_pred_ref[...], axis=-1, keepdims=True)  # (1, 1)
    # softmax normalization folded into the final scalar; divide -> EUP recip
    out_ref[...] = num * pl.reciprocal(denom, approx=True)


def sampler_step(weights, per_pred):
    """weights: (P,) f32, per_pred: (1, P) f32  ->  scalar f32."""
    P = weights.shape[0]
    w2 = weights.reshape(1, P).astype(jnp.float32)
    out = pl.pallas_call(
        sampler_step_kernel,
        out_shape=jax.ShapeDtypeStruct((1, 1), jnp.float32),
        in_specs=[
            pl.BlockSpec(memory_space=pltpu.MemorySpace.VMEM),
            pl.BlockSpec(memory_space=pltpu.MemorySpace.VMEM),
        ],
        out_specs=pl.BlockSpec(memory_space=pltpu.MemorySpace.VMEM),
    )(w2, per_pred)
    return out[0, 0]


def sampler_forward(weights, masks_t_bf16, dist):
    """Full Sampler forward (training path). masks/dist constant per molecule."""
    per_pred = precompute_per_pred(masks_t_bf16, dist)  # hoist out of train loop
    return sampler_step(weights, per_pred)


# ---------------------------------------------------------------------------
# Host-side glue: string predicate logic -> (P, P) mask matrix (numpy)
# ---------------------------------------------------------------------------
def build_predicate_masks(atom_ids):
    """Row j = i*N + jj corresponds to Predicate(atoms[i], atoms[jj], atoms);
    column index c = p*N + q corresponds to position (p, q) of dist."""
    atom_ids = np.asarray(atom_ids)
    n = atom_ids.shape[0]
    eq = (atom_ids[:, None] == atom_ids[None, :])          # eq[i, p]
    a_in = eq[:, :, None] | eq[:, None, :]                 # (N, N, N)
    mask = a_in[:, None, :, :] & a_in[None, :, :, :]       # (N, N, N, N)
    return mask.reshape(n * n, n * n)


def sampler_reference(weights, masks_flat, dist):
    """Pure-JAX f32 reference for correctness checking."""
    P = weights.shape[0]
    sm = jax.nn.softmax(weights.astype(jnp.float32))
    per_pred = masks_flat.astype(jnp.float32) @ dist.reshape(P).astype(jnp.float32)
    return jnp.dot(sm, per_pred)


if __name__ == "__main__":
    # Small, self-consistent shapes: N = maxAtoms = 16 atoms -> P = 256 predicates.
    N = 16
    P = N * N

    key = jax.random.PRNGKey(0)
    k_w, k_atoms, k_dist = jax.random.split(key, 3)

    # Sampler.weights ~ Normal(0, 1), shape (N*N,).
    weights = jax.random.normal(k_w, (P,), dtype=jnp.float32)

    # Deterministic "atoms" list: symbols from a small element set.
    element_table = ["C", "H", "O", "N"]
    atom_ids_np = np.array(
        jax.random.randint(k_atoms, (N,), 0, len(element_table)))
    atoms = [element_table[i] for i in atom_ids_np]  # the atom-symbol list

    # Deterministic symmetric "3D distance matrix" with zero diagonal.
    d = jax.random.uniform(k_dist, (N, N), dtype=jnp.float32, maxval=10.0)
    dist = (d + d.T) * 0.5
    dist = dist * (1.0 - jnp.eye(N, dtype=jnp.float32))
    adj = (dist < 2.0).astype(jnp.float32) * (1.0 - jnp.eye(N))  # unused (ADJ_OR_DIST='DIST')

    # Host-side predicate masks; store transposed + bf16 (lossless for 0/1).
    masks_np = build_predicate_masks(atom_ids_np)              # (P, P) bool
    masks_flat = jnp.asarray(masks_np.astype(np.float32))      # for the reference
    masks_t_bf16 = jnp.asarray(masks_np.T.astype(np.float32)).astype(jnp.bfloat16)

    out = sampler_forward(weights, masks_t_bf16, dist)
    out = jax.block_until_ready(out)

    ref = jax.block_until_ready(sampler_reference(weights, masks_flat, dist))
    np.testing.assert_allclose(np.array(out), np.array(ref), rtol=2e-3, atol=2e-3)

    print("KERNEL_OK")
</pallas_src>

<mosaic_0001>
module attributes {stable_mosaic.version = 11 : i64} {
  func.func @per_pred_kernel(%arg0: i32, %arg1: memref<1x256xf32, #tpu.memory_space<vmem>>, %arg2: memref<256x256xbf16, #tpu.memory_space<vmem>>, %arg3: memref<1x256xf32, #tpu.memory_space<vmem>>) attributes {dimension_semantics = [#tpu.dimension_semantics<parallel>], iteration_bounds = array<i64: 1>, scalar_prefetch = 0 : i64, scratch_operands = 0 : i64, tpu.core_type = #tpu.core_type<tc>, window_params = [{pipeline_mode = #tpu.pipeline_mode<synchronous>, transform_indices = @transform_0, window_bounds = array<i64: 1, 256>}, {transform_indices = @transform_1, window_bounds = array<i64: 256, 256>}, {transform_indices = @transform_2, window_bounds = array<i64: 1, 256>}]} {
    %c0 = arith.constant 0 : index
    %c0_0 = arith.constant 0 : index
    %0 = vector.load %arg2[%c0, %c0_0] : memref<256x256xbf16, #tpu.memory_space<vmem>>, vector<256x256xbf16>
    %1 = arith.extf %0 : vector<256x256xbf16> to vector<256x256xf32>
    %c0_1 = arith.constant 0 : index
    %c0_2 = arith.constant 0 : index
    %2 = vector.load %arg1[%c0_1, %c0_2] : memref<1x256xf32, #tpu.memory_space<vmem>>, vector<1x256xf32>
    %cst = arith.constant dense<0.000000e+00> : vector<1x256xf32>
    %3 = tpu.matmul %2, %1, %cst {dimension_numbers = #tpu.dot_dimension_numbers<[1], [0], [0], [1], [0, 0, 1, 1], [], []>} : vector<1x256xf32>, vector<256x256xf32>, vector<1x256xf32> -> vector<1x256xf32>
    %c0_3 = arith.constant 0 : index
    %c0_4 = arith.constant 0 : index
    %4 = vector.load %arg3[%c0_3, %c0_4] : memref<1x256xf32, #tpu.memory_space<vmem>>, vector<1x256xf32>
    tpu.vector_store %arg3[%c0_3, %c0_4], %3 {strides = array<i32>} : memref<1x256xf32, #tpu.memory_space<vmem>>, vector<1x256xf32>,
    return
  }
  func.func @transform_0(%arg0: i32) -> (i32, i32) {
    %c0_i32 = arith.constant 0 : i32
    %c0_i32_0 = arith.constant 0 : i32
    %c0_i32_1 = arith.constant 0 : i32
    return %c0_i32, %c0_i32_0 : i32, i32
  }
  func.func @transform_1(%arg0: i32) -> (i32, i32) {
    %c0_i32 = arith.constant 0 : i32
    %c0_i32_0 = arith.constant 0 : i32
    return %c0_i32, %arg0 : i32, i32
  }
  func.func @transform_2(%arg0: i32) -> (i32, i32) {
    %c0_i32 = arith.constant 0 : i32
    %c0_i32_0 = arith.constant 0 : i32
    return %c0_i32, %arg0 : i32, i32
  }
}

</mosaic_0001>

<llo_original>
// kernel: tpu_custom_call.1
$region0: #{tpu_custom_call.1}
  #allocation0 [shape = 'u32[]', space=smem, size = 0x4, offset = 0x4, fixed_abs, tag = 'smem constant byte address 0x4 - core index']
  #allocation1 [shape = 'u32[144,128]{1,0:T(1,128)}', space=vmem, size = 0x12000, scoped, tag = 'internal scratch']
  %s0 = inlined_call_operand.hbm [shape: f32[1,256], index: 0, kind: input, shape index: {}]
  %s1 = inlined_call_operand.hbm [shape: bf16[256,256], index: 1, kind: input, shape index: {}]
  %s2 = inlined_call_operand.hbm [shape: f32[1,256], index: 2, kind: output, shape index: {}]
  %s3 = sld [smem:[#allocation0]]
  $region26: #{tpu_custom_call.1} parent=0
    _
  %s5 = ssub.s32 1, %s3
  %s6 = scalar_select 0, %s5, %s3
  $region1: #{tpu_custom_call.1} parent=0
    #allocation2 [shape = 'u8[1024]{0}', space=vmem, size = 0x400, scoped, tag = 'input window, operand 0, single buffered']
    #allocation3 [shape = 's32[1]{0}', space=sflag, size = 0x4, scoped, tag = 'scoped memory for tpu_custom_call.1']
    #allocation4 [shape = 's32[1]{0}', space=sflag, size = 0x4, scoped, tag = 'scoped memory for tpu_custom_call.1']
    #allocation5 [shape = 'u8[131072]{0}', space=vmem, size = 0x20000, scoped, tag = 'input window, operand 1, single buffered']
    #allocation6 [shape = 's32[1]{0}', space=sflag, size = 0x4, scoped, tag = 'scoped memory for tpu_custom_call.1']
    #allocation7 [shape = 'u8[1024]{0}', space=vmem, size = 0x400, scoped, tag = 'output window, operand 0, single buffered']
    %7 = vsyncpa [#allocation3], 0
    %8 = vsyncpa [#allocation6], 0
    %9 = vsyncpa [#allocation4], 0
    // Predicated region
    $region2: #{tpu_custom_call.1} parent=1 // pred_check
      _
    $region3: #{tpu_custom_call.1} parent=1 // pred_check_branch
      %11 = sbr.rel (0) target = $region5
    $region4: #{tpu_custom_call.1} parent=1 // pred_region
      %s13 = ssub.s32 32, 32
      %14 = vsyncadd [#allocation3], %s13
      %s16 = sshll.u32 [#allocation2], 4
      %s17 = int_to_ptr.vmem [resolvable:$true] %s16
      %19 = dma.hbm_to_vmem [thread:$0]  %s0, 32, %s17, [#allocation3]
    $region5: #{tpu_custom_call.1} parent=1 // pred_fallthru
      _
    // Predicated region
    $region6: #{tpu_custom_call.1} parent=1 // pred_check
      _
    $region7: #{tpu_custom_call.1} parent=1 // pred_check_branch
      %21 = sbr.rel (0) target = $region9
    $region8: #{tpu_custom_call.1} parent=1 // pred_region
      %s23 = ssub.s32 4096, 4096
      %24 = vsyncadd [#allocation6], %s23
      %s25 = sshll.u32 [#allocation5], 4
      %s26 = int_to_ptr.vmem [resolvable:$true] %s25
      %31 = dma.hbm_to_vmem [thread:$0]  %s1, 4096, %s26, [#allocation6], 128, 128, 8
    $region9: #{tpu_custom_call.1} parent=1 // pred_fallthru
      _
    // Predicated region
    $region10: #{tpu_custom_call.1} parent=1 // pred_check
      _
    $region11: #{tpu_custom_call.1} parent=1 // pred_check_branch
      %33 = sbr.rel (0) target = $region13
    $region12: #{tpu_custom_call.1} parent=1 // pred_region
      %34 = dma.done [#allocation3], 32
    $region13: #{tpu_custom_call.1} parent=1 // pred_fallthru
      _
    // Predicated region
    $region14: #{tpu_custom_call.1} parent=1 // pred_check
      _
    $region15: #{tpu_custom_call.1} parent=1 // pred_check_branch
      %36 = sbr.rel (0) target = $region17
    $region16: #{tpu_custom_call.1} parent=1 // pred_region
      %37 = dma.done [#allocation6], 4096
    $region17: #{tpu_custom_call.1} parent=1 // pred_fallthru
      _
    %v38 = vld [vmem:[#allocation5] sm:$0xff]
    %v39 = vld [vmem:[#allocation5 + $0x8] sm:$0xff]
    %v40 = vld [vmem:[#allocation5 + $0x10] sm:$0xff]
    %v41 = vld [vmem:[#allocation5 + $0x18] sm:$0xff]
    %v42 = vld [vmem:[#allocation5 + $0x20] sm:$0xff]
    %v43 = vld [vmem:[#allocation5 + $0x28] sm:$0xff]
    %v44 = vld [vmem:[#allocation5 + $0x30] sm:$0xff]
    %v45 = vld [vmem:[#allocation5 + $0x38] sm:$0xff]
    %v46 = vld [vmem:[#allocation5 + $0x40] sm:$0xff]
    %v47 = vld [vmem:[#allocation5 + $0x48] sm:$0xff]
    %v48 = vld [vmem:[#allocation5 + $0x50] sm:$0xff]
    %v49 = vld [vmem:[#allocation5 + $0x58] sm:$0xff]
    %v50 = vld [vmem:[#allocation5 + $0x60] sm:$0xff]
    %v51 = vld [vmem:[#allocation5 + $0x68] sm:$0xff]
    %v52 = vld [vmem:[#allocation5 + $0x70] sm:$0xff]
    %v53 = vld [vmem:[#allocation5 + $0x78] sm:$0xff]
    %v54 = vld [vmem:[#allocation5 + $0x80] sm:$0xff]
    %v55 = vld [vmem:[#allocation5 + $0x88] sm:$0xff]
    %v56 = vld [vmem:[#allocation5 + $0x90] sm:$0xff]
    %v57 = vld [vmem:[#allocation5 + $0x98] sm:$0xff]
    %v58 = vld [vmem:[#allocation5 + $0xa0] sm:$0xff]
    %v59 = vld [vmem:[#allocation5 + $0xa8] sm:$0xff]
    %v60 = vld [vmem:[#allocation5 + $0xb0] sm:$0xff]
    %v61 = vld [vmem:[#allocation5 + $0xb8] sm:$0xff]
    %v62 = vld [vmem:[#allocation5 + $0xc0] sm:$0xff]
    %v63 = vld [vmem:[#allocation5 + $0xc8] sm:$0xff]
    %v64 = vld [vmem:[#allocation5 + $0xd0] sm:$0xff]
    %v65 = vld [vmem:[#allocation5 + $0xd8] sm:$0xff]
    %v66 = vld [vmem:[#allocation5 + $0xe0] sm:$0xff]
    %v67 = vld [vmem:[#allocation5 + $0xe8] sm:$0xff]
    %v68 = vld [vmem:[#allocation5 + $0xf0] sm:$0xff]
    %v69 = vld [vmem:[#allocation5 + $0xf8] sm:$0xff]
    %v70 = vunpack.c.l.bf16 %v38
    %v71 = vunpack.c.h.bf16 %v38
    %v72 = vunpack.c.l.bf16 %v39
    %v73 = vunpack.c.h.bf16 %v39
    %v74 = vunpack.c.l.bf16 %v40
    %v75 = vunpack.c.h.bf16 %v40
    %v76 = vunpack.c.l.bf16 %v41
    %v77 = vunpack.c.h.bf16 %v41
    %v78 = vunpack.c.l.bf16 %v42
    %v79 = vunpack.c.h.bf16 %v42
    %v80 = vunpack.c.l.bf16 %v43
    %v81 = vunpack.c.h.bf16 %v43
    %v82 = vunpack.c.l.bf16 %v44
    %v83 = vunpack.c.h.bf16 %v44
    %v84 = vunpack.c.l.bf16 %v45
    %v85 = vunpack.c.h.bf16 %v45
    %v86 = vunpack.c.l.bf16 %v46
    %v87 = vunpack.c.h.bf16 %v46
    %v88 = vunpack.c.l.bf16 %v47
    %v89 = vunpack.c.h.bf16 %v47
    %v90 = vunpack.c.l.bf16 %v48
    %v91 = vunpack.c.h.bf16 %v48
    %v92 = vunpack.c.l.bf16 %v49
    %v93 = vunpack.c.h.bf16 %v49
    %v94 = vunpack.c.l.bf16 %v50
    %v95 = vunpack.c.h.bf16 %v50
    %v96 = vunpack.c.l.bf16 %v51
    %v97 = vunpack.c.h.bf16 %v51
    %v98 = vunpack.c.l.bf16 %v52
    %v99 = vunpack.c.h.bf16 %v52
    %v100 = vunpack.c.l.bf16 %v53
    %v101 = vunpack.c.h.bf16 %v53
    %v102 = vunpack.c.l.bf16 %v54
    %v103 = vunpack.c.h.bf16 %v54
    %v104 = vunpack.c.l.bf16 %v55
    %v105 = vunpack.c.h.bf16 %v55
    %v106 = vunpack.c.l.bf16 %v56
    %v107 = vunpack.c.h.bf16 %v56
    %v108 = vunpack.c.l.bf16 %v57
    %v109 = vunpack.c.h.bf16 %v57
    %v110 = vunpack.c.l.bf16 %v58
    %v111 = vunpack.c.h.bf16 %v58
    %v112 = vunpack.c.l.bf16 %v59
    %v113 = vunpack.c.h.bf16 %v59
    %v114 = vunpack.c.l.bf16 %v60
    %v115 = vunpack.c.h.bf16 %v60
    %v116 = vunpack.c.l.bf16 %v61
    %v117 = vunpack.c.h.bf16 %v61
    %v118 = vunpack.c.l.bf16 %v62
    %v119 = vunpack.c.h.bf16 %v62
    %v120 = vunpack.c.l.bf16 %v63
    %v121 = vunpack.c.h.bf16 %v63
    %v122 = vunpack.c.l.bf16 %v64
    %v123 = vunpack.c.h.bf16 %v64
    %v124 = vunpack.c.l.bf16 %v65
    %v125 = vunpack.c.h.bf16 %v65
    %v126 = vunpack.c.l.bf16 %v66
    %v127 = vunpack.c.h.bf16 %v66
    %v128 = vunpack.c.l.bf16 %v67
    %v129 = vunpack.c.h.bf16 %v67
    %v130 = vunpack.c.l.bf16 %v68
    %v131 = vunpack.c.h.bf16 %v68
    %v132 = vunpack.c.l.bf16 %v69
    %v133 = vunpack.c.h.bf16 %v69
    %v134 = vld [vmem:[#allocation2] sm:$0x3]
    %v136 = vlaneseq
    %v137 = vshrl.u32 %v136, 7
    %v138 = vsub.s32 0, %v137
    %v139 = vrot.slane %v134, %v138
    %v140 = vlaneseq
    %v141 = vshrl.u32 %v140, 7
    %v142 = vsub.s32 1, %v141
    %v143 = vrot.slane %v134, %v142
    %146 = vmatprep.subr.mxu0 %v71
    %147 = vmatpush1.msra.mxu0 %v70
    %148 = vmatprep.subr.mxu0 %v73
    %149 = vmatpush1.msra.mxu0 %v72
    %150 = vmatprep.subr.mxu0 %v75
    %151 = vmatpush1.msra.mxu0 %v74
    %152 = vmatprep.subr.mxu0 %v77
    %153 = vmatpush1.msra.mxu0 %v76
    %154 = vmatprep.subr.mxu0 %v79
    %155 = vmatpush1.msra.mxu0 %v78
    %156 = vmatprep.subr.mxu0 %v81
    %157 = vmatpush1.msra.mxu0 %v80
    %158 = vmatprep.subr.mxu0 %v83
    %159 = vmatpush1.msra.mxu0 %v82
    %160 = vmatprep.subr.mxu0 %v85
    %161 = vmatpush1.msra.mxu0 %v84
    %162 = vmatprep.subr.mxu0 %v87
    %163 = vmatpush1.msra.mxu0 %v86
    %164 = vmatprep.subr.mxu0 %v89
    %165 = vmatpush1.msra.mxu0 %v88
    %166 = vmatprep.subr.mxu0 %v91
    %167 = vmatpush1.msra.mxu0 %v90
    %168 = vmatprep.subr.mxu0 %v93
    %169 = vmatpush1.msra.mxu0 %v92
    %170 = vmatprep.subr.mxu0 %v95
    %171 = vmatpush1.msra.mxu0 %v94
    %172 = vmatprep.subr.mxu0 %v97
    %173 = vmatpush1.msra.mxu0 %v96
    %174 = vmatprep.subr.mxu0 %v99
    %175 = vmatpush1.msra.mxu0 %v98
    %176 = vmatprep.subr.mxu0 %v101
    %177 = vmatpush1.msra.mxu0 %v100
    %178 = vmatprep.subr.mxu0 %v103
    %179 = vmatpush1.msra.mxu0 %v102
    %180 = vmatprep.subr.mxu0 %v105
    %181 = vmatpush1.msra.mxu0 %v104
    %182 = vmatprep.subr.mxu0 %v107
    %183 = vmatpush1.msra.mxu0 %v106
    %184 = vmatprep.subr.mxu0 %v109
    %185 = vmatpush1.msra.mxu0 %v108
    %186 = vmatprep.subr.mxu0 %v111
    %187 = vmatpush1.msra.mxu0 %v110
    %188 = vmatprep.subr.mxu0 %v113
    %189 = vmatpush1.msra.mxu0 %v112
    %190 = vmatprep.subr.mxu0 %v115
    %191 = vmatpush1.msra.mxu0 %v114
    %192 = vmatprep.subr.mxu0 %v117
    %193 = vmatpush1.msra.mxu0 %v116
    %194 = vmatprep.subr.mxu0 %v119
    %195 = vmatpush1.msra.mxu0 %v118
    %196 = vmatprep.subr.mxu0 %v121
    %197 = vmatpush1.msra.mxu0 %v120
    %198 = vmatprep.subr.mxu0 %v123
    %199 = vmatpush1.msra.mxu0 %v122
    %200 = vmatprep.subr.mxu0 %v125
    %201 = vmatpush1.msra.mxu0 %v124
    %202 = vmatprep.subr.mxu0 %v127
    %203 = vmatpush1.msra.mxu0 %v126
    %204 = vmatprep.subr.mxu0 %v129
    %205 = vmatpush1.msra.mxu0 %v128
    %206 = vmatprep.subr.mxu0 %v131
    %207 = vmatpush1.msra.mxu0 %v130
    %208 = vmatprep.subr.mxu0 %v133
    %209 = vmatpush1.msra.mxu0 %v132
    %210 = vmatprep.mubr.f32.mxu0 %v143
    %211 = vmatmul.mubr.f32.gmra.mrb[0].mxu0 %v139
    %v212 = vpop.f32.mrb[0].mxu0
    %v213 = vadd.f32 0.0, %v212
    %v214 = vpop.f32.mrb[0].mxu0
    %v215 = vadd.f32 0.0, %v214
    %216 = vdwg.mxu0
    %v219 = vcombine.low %v213, %v215
    %v221 = vunpack.c.l.s4 1966171168
    %v222 = vunpack.c.0.s8 %v221
    %v223 = vlaneseq
    %v224 = vshrl.u32 %v223, 7
    %v225 = vsub.s32 %v222, %v224
    %v226 = vrot.slane %v219, %v225
    %v228 = vunpack.c.l.s4 1966171168
    %v229 = vunpack.c.0.s8 %v228
    %v230 = vlaneseq
    %v231 = vshrl.u32 %v230, 7
    %v232 = vsub.s32 %v229, %v231
    %v233 = vrot.slane %v226, %v232
    %v235 = vlaneseq
    %vm236 = vcmp.ge.s32.totalorder %v235, 0
    %vm237 = vcmp.lt.s32.totalorder %v235, 256
    %vm238 = vmand %vm236, %vm237
    %239 = vst.msk [vmem:[#allocation7] sm:$0x3] %vm238, %v233
    // Predicated region
    $region18: #{tpu_custom_call.1} parent=1 // pred_check
      _
    $region19: #{tpu_custom_call.1} parent=1 // pred_check_branch
      %241 = sbr.rel (0) target = $region21
    $region20: #{tpu_custom_call.1} parent=1 // pred_region
      %s243 = ssub.s32 32, 32
      %244 = vsyncadd [#allocation4], %s243
      %s246 = sshll.u32 [#allocation7], 4
      %s247 = int_to_ptr.vmem [resolvable:$true] %s246
      %249 = dma.vmem_to_hbm [thread:$0]  %s247, 32, %s2, [#allocation4]
    $region21: #{tpu_custom_call.1} parent=1 // pred_fallthru
      _
    // Predicated region
    $region22: #{tpu_custom_call.1} parent=1 // pred_check
      _
    $region23: #{tpu_custom_call.1} parent=1 // pred_check_branch
      %251 = sbr.rel (0) target = $region25
    $region24: #{tpu_custom_call.1} parent=1 // pred_region
      %252 = dma.done [#allocation4], 32
    $region25: #{tpu_custom_call.1} parent=1 // pred_fallthru
      _
    %253 = vsyncpa [#allocation3], 1
    %254 = vsyncpa [#allocation6], 1
    %255 = vsyncpa [#allocation4], 1

</llo_original>
